<compile_context>
chip_gen: v7x
topology: tpu7x:2x2x1
jax: 0.10.0
libtpu: 0.0.40
codegen_flags: <defaults>
</compile_context>

<pallas_src>
import jax
import jax.numpy as jnp
from jax.experimental import pallas as pl
from jax.experimental.pallas import tpu as pltpu


# --------------------------------------------------------------------------------------
# Tiling helper
# --------------------------------------------------------------------------------------
def _pick_tile(s, cap):
    """Largest multiple-of-128 divisor of `s` that is <= cap (no padding needed).
    Falls back to a padded layout only when no such divisor exists."""
    cap = max(128, int(cap))
    if s % 128 == 0:
        base = s // 128
        for k in range(min(cap // 128, base), 0, -1):
            if base % k == 0:
                return 128 * k, s                      # (tile, padded_S) -- no padding
    t = max(128, min((cap // 128) * 128, ((s + 127) // 128) * 128))
    s_pad = ((s + t - 1) // t) * t
    return t, s_pad


# --------------------------------------------------------------------------------------
# Forward pass
# --------------------------------------------------------------------------------------
def attention_block_forward(skip, gate, w_up, w_x, w_phi, w_f, gamma, beta,
                            *, n_groups=8, eps=1e-5, tile_cap=16384):
    """Forward pass of `attention_block`.

    skip  : (N, Cs, D, H, W)           skip_connection
    gate  : (N, Cg, D/2, H/2, W/2)     gate_signal
    w_up  : (Cg, Cs, 2, 2, 2)          ConvTranspose3d weight (PyTorch layout)
    w_x   : (Ci, Cs)                   W_x 1x1x1 conv weight (squeezed)
    w_phi : (1, Ci)                    phi 1x1x1 conv weight (squeezed)
    w_f   : (Cs, Cs)                   final 1x1x1 conv weight (squeezed)
    gamma, beta : (Cs,)                GroupNorm affine parameters
    returns (N, Cs, D, H, W)
    """
    N, Cs, D, H, W = skip.shape
    _, Cg, Dh, Hh, Wh = gate.shape
    Ci = w_x.shape[0]
    G = n_groups
    assert Cs % G == 0, "GroupNorm requires channels divisible by n_groups"
    # TODO(synk): the nn.Upsample(mode='trilinear', align_corners=True) fallback branch
    # (taken only when the ConvTranspose output size differs from skip's) is not
    # implemented; inputs must satisfy the shape-matched path.
    assert (2 * Dh, 2 * Hh, 2 * Wh) == (D, H, W), "trilinear resize path not implemented"

    dtype = skip.dtype
    S = D * H * W
    HW = H * W

    # ---- tiny XLA pre-work (all on O(Cg*S/8) or O(weights) data) -----------------------
    # Composed (W_x o ConvTranspose3d) weight, one (Ci, Cg) block per (kd, kh, kw) parity.
    w_g8 = jnp.einsum("ic,gcdhw->dhwig", w_x, w_up).reshape(8 * Ci, Cg).astype(jnp.float32)
    # Nearest-neighbour expanded gate: gate_nn[n, cg, s(d,h,w)] = gate[n, cg, d//2, h//2, w//2].
    gate_nn = jnp.repeat(jnp.repeat(jnp.repeat(gate, 2, axis=2), 2, axis=3), 2, axis=4)
    gate_nn = gate_nn.reshape(N, Cg, S)
    skip_flat = skip.reshape(N, Cs, S)                 # free view of NCDHW

    tS, S_pad = _pick_tile(S, tile_cap)
    if S_pad != S:
        # Fallback only; zeros in skip give c == 0 exactly, so stats stay unbiased.
        pad = ((0, 0), (0, 0), (0, S_pad - S))
        skip_flat = jnp.pad(skip_flat, pad)
        gate_nn = jnp.pad(gate_nn, pad)
    T = S_pad // tS
    P = 2 if (T % 2 == 0 and T >= 2) else 1            # parallel spatial split (v7x megacore)
    TP = T // P

    # ---- shared in-kernel math: recompute c for one (Cs, tS) spatial tile --------------
    def _compute_c(skip_t, gate_t, wx, wg, phi, wf, tile_idx):
        # Global fine flat index of each lane -> (d%2, h%2, w%2) parity masks.
        flat = jax.lax.broadcasted_iota(jnp.int32, (1, tS), 1) + tile_idx * tS

        def _div(x, d):
            if d & (d - 1) == 0:
                return jnp.right_shift(x, d.bit_length() - 1)
            return x // d

        sel_kw = jnp.bitwise_and(flat, 1) == 1                      # w parity (W even)
        sel_kh = jnp.bitwise_and(_div(flat, W), 1) == 1             # h parity (H even)
        sel_kd = jnp.bitwise_and(_div(flat, HW), 1) == 1            # d parity

        sx = jnp.dot(wx, skip_t, preferred_element_type=jnp.float32)         # (Ci, tS)
        gx_all = jnp.dot(wg, gate_t, preferred_element_type=jnp.float32)     # (8*Ci, tS)
        blocks = [gx_all[k * Ci:(k + 1) * Ci, :] for k in range(8)]          # k = kd*4+kh*2+kw
        lvl_kw = [jnp.where(sel_kw, blocks[2 * j + 1], blocks[2 * j]) for j in range(4)]
        lvl_kh = [jnp.where(sel_kh, lvl_kw[2 * j + 1], lvl_kw[2 * j]) for j in range(2)]
        gx = jnp.where(sel_kd, lvl_kh[1], lvl_kh[0])                          # (Ci, tS)

        a = gx + sx
        a = a * jax.nn.sigmoid(a)                                             # SiLU
        att = jax.nn.sigmoid(jnp.dot(phi, a, preferred_element_type=jnp.float32))  # (1, tS)
        m = skip_t * att
        return jnp.dot(wf, m, preferred_element_type=jnp.float32)            # (Cs, tS)

    # ---- kernel A: GroupNorm partial sums of c (no c written to HBM) -------------------
    def stats_kernel(skip_ref, gate_ref, wx_ref, wg_ref, phi_ref, wf_ref,
                     ssum_ref, ssq_ref):
        p = pl.program_id(1)
        t = pl.program_id(2)
        c = _compute_c(skip_ref[0], gate_ref[0], wx_ref[...], wg_ref[...],
                       phi_ref[...], wf_ref[...], p * TP + t)
        s1 = jnp.sum(c, axis=1, keepdims=True)                                # (Cs, 1)
        s2 = jnp.sum(c * c, axis=1, keepdims=True)                            # (Cs, 1)

        @pl.when(t == 0)
        def _():
            ssum_ref[0, 0] = s1
            ssq_ref[0, 0] = s2

        @pl.when(t > 0)
        def _():
            ssum_ref[0, 0] += s1
            ssq_ref[0, 0] += s2

    ssum, ssq = pl.pallas_call(
        stats_kernel,
        out_shape=(jax.ShapeDtypeStruct((N, P, Cs, 1), jnp.float32),
                   jax.ShapeDtypeStruct((N, P, Cs, 1), jnp.float32)),
        grid=(N, P, TP),
        in_specs=[
            pl.BlockSpec((1, Cs, tS), lambda n, p, t: (n, 0, p * TP + t)),    # skip
            pl.BlockSpec((1, Cg, tS), lambda n, p, t: (n, 0, p * TP + t)),    # NN-expanded gate
            pl.BlockSpec((Ci, Cs), lambda n, p, t: (0, 0)),                   # W_x (resident)
            pl.BlockSpec((8 * Ci, Cg), lambda n, p, t: (0, 0)),               # composed gate weight
            pl.BlockSpec((1, Ci), lambda n, p, t: (0, 0)),                    # phi
            pl.BlockSpec((Cs, Cs), lambda n, p, t: (0, 0)),                   # final 1x1 conv
        ],
        out_specs=(
            pl.BlockSpec((1, 1, Cs, 1), lambda n, p, t: (n, p, 0, 0)),        # resident accumulators
            pl.BlockSpec((1, 1, Cs, 1), lambda n, p, t: (n, p, 0, 0)),
        ),
        compiler_params=pltpu.CompilerParams(
            dimension_semantics=("parallel", "parallel", "arbitrary")),
    )(skip_flat, gate_nn, w_x, w_g8, w_phi, w_f)

    # ---- tiny XLA glue: finish GroupNorm statistics (O(N*Cs)) --------------------------
    cnt = (Cs // G) * S
    ssum_c = jnp.sum(ssum, axis=1)[..., 0]                 # (N, Cs)
    ssq_c = jnp.sum(ssq, axis=1)[..., 0]                   # (N, Cs)
    gsum = ssum_c.reshape(N, G, Cs // G).sum(axis=2)       # (N, G)
    gsq = ssq_c.reshape(N, G, Cs // G).sum(axis=2)         # (N, G)
    mean = gsum / cnt
    var = jnp.maximum(gsq / cnt - mean * mean, 0.0)        # single-pass var, f32 (see note)
    inv = jax.lax.rsqrt(var + eps)
    mean_ch = jnp.repeat(mean, Cs // G, axis=1)            # (N, Cs)
    inv_ch = jnp.repeat(inv, Cs // G, axis=1)              # (N, Cs)
    scale = (inv_ch * gamma[None, :]).reshape(N, Cs, 1).astype(jnp.float32)
    shift = (beta[None, :] - mean_ch * inv_ch * gamma[None, :]).reshape(N, Cs, 1)
    shift = shift.astype(jnp.float32)

    # ---- kernel B: recompute c, normalize, SiLU, store ---------------------------------
    def norm_kernel(skip_ref, gate_ref, wx_ref, wg_ref, phi_ref, wf_ref,
                    scale_ref, shift_ref, o_ref):
        t = pl.program_id(1)
        c = _compute_c(skip_ref[0], gate_ref[0], wx_ref[...], wg_ref[...],
                       phi_ref[...], wf_ref[...], t)
        y = c * scale_ref[0] + shift_ref[0]
        o_ref[0] = (y * jax.nn.sigmoid(y)).astype(o_ref.dtype)               # SiLU(GroupNorm)

    out = pl.pallas_call(
        norm_kernel,
        out_shape=jax.ShapeDtypeStruct((N, Cs, S_pad), dtype),
        grid=(N, T),
        in_specs=[
            pl.BlockSpec((1, Cs, tS), lambda n, t: (n, 0, t)),
            pl.BlockSpec((1, Cg, tS), lambda n, t: (n, 0, t)),
            pl.BlockSpec((Ci, Cs), lambda n, t: (0, 0)),
            pl.BlockSpec((8 * Ci, Cg), lambda n, t: (0, 0)),
            pl.BlockSpec((1, Ci), lambda n, t: (0, 0)),
            pl.BlockSpec((Cs, Cs), lambda n, t: (0, 0)),
            pl.BlockSpec((1, Cs, 1), lambda n, t: (n, 0, 0)),                 # per-sample scale
            pl.BlockSpec((1, Cs, 1), lambda n, t: (n, 0, 0)),                 # per-sample shift
        ],
        out_specs=pl.BlockSpec((1, Cs, tS), lambda n, t: (n, 0, t)),
        compiler_params=pltpu.CompilerParams(
            dimension_semantics=("parallel", "parallel")),
    )(skip_flat, gate_nn, w_x, w_g8, w_phi, w_f, scale, shift)

    if S_pad != S:
        out = out[:, :, :S]
    return out.reshape(N, Cs, D, H, W)


# --------------------------------------------------------------------------------------
# Pure-JAX reference (mirrors the PyTorch module exactly)
# --------------------------------------------------------------------------------------
def _attention_block_ref(skip, gate, w_up, w_x, w_phi, w_f, gamma, beta,
                         *, n_groups, eps=1e-5):
    N, Cs, D, H, W = skip.shape
    # ConvTranspose3d(k=2, s=2, bias=False)
    g = jnp.einsum("ngdhw,gsabc->nsdahbwc", gate, w_up).reshape(N, Cs, D, H, W)
    gx = jnp.einsum("is,nsdhw->nidhw", w_x, g)
    sx = jnp.einsum("is,nsdhw->nidhw", w_x, skip)
    a = jax.nn.silu(gx + sx)
    att = jax.nn.sigmoid(jnp.einsum("oi,nidhw->nodhw", w_phi, a))
    m = skip * att
    c = jnp.einsum("os,nsdhw->nodhw", w_f, m)
    cg = c.reshape(N, n_groups, Cs // n_groups, D, H, W)
    mean = cg.mean(axis=(2, 3, 4, 5), keepdims=True)
    var = cg.var(axis=(2, 3, 4, 5), keepdims=True)
    y = ((cg - mean) / jnp.sqrt(var + eps)).reshape(N, Cs, D, H, W)
    y = y * gamma[None, :, None, None, None] + beta[None, :, None, None, None]
    return jax.nn.silu(y)


if __name__ == "__main__":
    key = jax.random.PRNGKey(0)
    ks = jax.random.split(key, 8)

    N = 2
    skip_channels, gate_channels = 16, 8
    inter_channels = skip_channels // 2          # module default
    n_groups = 8
    D, H, W = 4, 16, 16                          # skip spatial (S = 1024)
    Dh, Hh, Wh = D // 2, H // 2, W // 2          # gate spatial (ConvT k=2,s=2 doubles it)

    skip = jax.random.normal(ks[0], (N, skip_channels, D, H, W), jnp.float32)
    gate = jax.random.normal(ks[1], (N, gate_channels, Dh, Hh, Wh), jnp.float32)

    w_up = 0.2 * jax.random.normal(ks[2], (gate_channels, skip_channels, 2, 2, 2), jnp.float32)
    w_x = 0.2 * jax.random.normal(ks[3], (inter_channels, skip_channels), jnp.float32)
    w_phi = 0.2 * jax.random.normal(ks[4], (1, inter_channels), jnp.float32)
    w_f = 0.2 * jax.random.normal(ks[5], (skip_channels, skip_channels), jnp.float32)
    gamma = 1.0 + 0.1 * jax.random.normal(ks[6], (skip_channels,), jnp.float32)
    beta = 0.1 * jax.random.normal(ks[7], (skip_channels,), jnp.float32)

    # Small tile cap so the multi-tile accumulation + parallel spatial-split paths are
    # exercised even at these small demo shapes (S=1024 -> tS=256, T=4, P=2).
    out = attention_block_forward(skip, gate, w_up, w_x, w_phi, w_f, gamma, beta,
                                  n_groups=n_groups, tile_cap=256)
    out = jax.block_until_ready(out)

    ref = _attention_block_ref(skip, gate, w_up, w_x, w_phi, w_f, gamma, beta,
                               n_groups=n_groups)
    assert out.shape == (N, skip_channels, D, H, W), out.shape
    err = float(jnp.max(jnp.abs(out - ref)))
    assert jnp.allclose(out, ref, atol=2e-3, rtol=2e-3), f"mismatch vs reference: {err}"
    print("KERNEL_OK")
</pallas_src>

<mosaic_0001>
module attributes {stable_mosaic.version = 11 : i64} {
  func.func @stats_kernel(%arg0: i32, %arg1: i32, %arg2: i32, %arg3: memref<1x16x256xf32, #tpu.memory_space<vmem>>, %arg4: memref<1x8x256xf32, #tpu.memory_space<vmem>>, %arg5: memref<8x16xf32, #tpu.memory_space<vmem>>, %arg6: memref<64x8xf32, #tpu.memory_space<vmem>>, %arg7: memref<1x8xf32, #tpu.memory_space<vmem>>, %arg8: memref<16x16xf32, #tpu.memory_space<vmem>>, %arg9: memref<1x1x16x1xf32, #tpu.memory_space<vmem>>, %arg10: memref<1x1x16x1xf32, #tpu.memory_space<vmem>>) attributes {dimension_semantics = [#tpu.dimension_semantics<parallel>, #tpu.dimension_semantics<parallel>, #tpu.dimension_semantics<arbitrary>], iteration_bounds = array<i64: 2, 2, 2>, scalar_prefetch = 0 : i64, scratch_operands = 0 : i64, tpu.core_type = #tpu.core_type<tc>, window_params = [{transform_indices = @transform_0, window_bounds = array<i64: 1, 16, 256>}, {transform_indices = @transform_1, window_bounds = array<i64: 1, 8, 256>}, {pipeline_mode = #tpu.pipeline_mode<synchronous>, transform_indices = @transform_2, window_bounds = array<i64: 8, 16>}, {pipeline_mode = #tpu.pipeline_mode<synchronous>, transform_indices = @transform_3, window_bounds = array<i64: 64, 8>}, {pipeline_mode = #tpu.pipeline_mode<synchronous>, transform_indices = @transform_4, window_bounds = array<i64: 1, 8>}, {pipeline_mode = #tpu.pipeline_mode<synchronous>, transform_indices = @transform_5, window_bounds = array<i64: 16, 16>}, {transform_indices = @transform_6, window_bounds = array<i64: 1, 1, 16, 1>}, {transform_indices = @transform_7, window_bounds = array<i64: 1, 1, 16, 1>}]} {
    %c0 = arith.constant 0 : index
    %c0_0 = arith.constant 0 : index
    %c0_1 = arith.constant 0 : index
    %0 = vector.load %arg3[%c0, %c0_0, %c0_1] : memref<1x16x256xf32, #tpu.memory_space<vmem>>, vector<1x16x256xf32>
    %1 = vector.shape_cast %0 : vector<1x16x256xf32> to vector<16x256xf32>
    %c0_2 = arith.constant 0 : index
    %c0_3 = arith.constant 0 : index
    %c0_4 = arith.constant 0 : index
    %2 = vector.load %arg4[%c0_2, %c0_3, %c0_4] : memref<1x8x256xf32, #tpu.memory_space<vmem>>, vector<1x8x256xf32>
    %3 = vector.shape_cast %2 : vector<1x8x256xf32> to vector<8x256xf32>
    %c0_5 = arith.constant 0 : index
    %c0_6 = arith.constant 0 : index
    %4 = vector.load %arg5[%c0_5, %c0_6] : memref<8x16xf32, #tpu.memory_space<vmem>>, vector<8x16xf32>
    %c0_7 = arith.constant 0 : index
    %c0_8 = arith.constant 0 : index
    %5 = vector.load %arg6[%c0_7, %c0_8] : memref<64x8xf32, #tpu.memory_space<vmem>>, vector<64x8xf32>
    %c0_9 = arith.constant 0 : index
    %c0_10 = arith.constant 0 : index
    %6 = vector.load %arg7[%c0_9, %c0_10] : memref<1x8xf32, #tpu.memory_space<vmem>>, vector<1x8xf32>
    %c0_11 = arith.constant 0 : index
    %c0_12 = arith.constant 0 : index
    %7 = vector.load %arg8[%c0_11, %c0_12] : memref<16x16xf32, #tpu.memory_space<vmem>>, vector<16x16xf32>
    %c2_i32 = arith.constant 2 : i32
    %8 = arith.muli %arg1, %c2_i32 : i32
    %9 = arith.addi %8, %arg2 : i32
    %10 = tpu.iota {dimensions = array<i32: 1>} : vector<1x256xi32>
    %c256_i32 = arith.constant 256 : i32
    %11 = arith.muli %9, %c256_i32 : i32
    %12 = vector.broadcast %11 : i32 to vector<1x256xi32>
    %13 = arith.addi %10, %12 : vector<1x256xi32>
    %c1_i32 = arith.constant 1 : i32
    %14 = vector.broadcast %c1_i32 : i32 to vector<1x256xi32>
    %15 = arith.andi %13, %14 : vector<1x256xi32>
    %c1_i32_13 = arith.constant 1 : i32
    %16 = vector.broadcast %c1_i32_13 : i32 to vector<1x256xi32>
    %17 = arith.cmpi eq, %15, %16 : vector<1x256xi32>
    %c4_i32 = arith.constant 4 : i32
    %18 = vector.broadcast %c4_i32 : i32 to vector<1x256xi32>
    %19 = arith.shrsi %13, %18 : vector<1x256xi32>
    %c1_i32_14 = arith.constant 1 : i32
    %20 = vector.broadcast %c1_i32_14 : i32 to vector<1x256xi32>
    %21 = arith.andi %19, %20 : vector<1x256xi32>
    %c1_i32_15 = arith.constant 1 : i32
    %22 = vector.broadcast %c1_i32_15 : i32 to vector<1x256xi32>
    %23 = arith.cmpi eq, %21, %22 : vector<1x256xi32>
    %c8_i32 = arith.constant 8 : i32
    %24 = vector.broadcast %c8_i32 : i32 to vector<1x256xi32>
    %25 = arith.shrsi %13, %24 : vector<1x256xi32>
    %c1_i32_16 = arith.constant 1 : i32
    %26 = vector.broadcast %c1_i32_16 : i32 to vector<1x256xi32>
    %27 = arith.andi %25, %26 : vector<1x256xi32>
    %c1_i32_17 = arith.constant 1 : i32
    %28 = vector.broadcast %c1_i32_17 : i32 to vector<1x256xi32>
    %29 = arith.cmpi eq, %27, %28 : vector<1x256xi32>
    %cst = arith.constant dense<0.000000e+00> : vector<8x256xf32>
    %30 = tpu.matmul %4, %1, %cst {dimension_numbers = #tpu.dot_dimension_numbers<[1], [0], [0], [1], [0, 0, 1, 1], [], []>} : vector<8x16xf32>, vector<16x256xf32>, vector<8x256xf32> -> vector<8x256xf32>
    %cst_18 = arith.constant dense<0.000000e+00> : vector<64x256xf32>
    %31 = tpu.matmul %5, %3, %cst_18 {dimension_numbers = #tpu.dot_dimension_numbers<[1], [0], [0], [1], [0, 0, 1, 1], [], []>} : vector<64x8xf32>, vector<8x256xf32>, vector<64x256xf32> -> vector<64x256xf32>
    %32 = vector.extract_strided_slice %31 {offsets = [0, 0], sizes = [8, 256], strides = [1, 1]} : vector<64x256xf32> to vector<8x256xf32>
    %33 = vector.extract_strided_slice %31 {offsets = [8, 0], sizes = [8, 256], strides = [1, 1]} : vector<64x256xf32> to vector<8x256xf32>
    %34 = vector.extract_strided_slice %31 {offsets = [16, 0], sizes = [8, 256], strides = [1, 1]} : vector<64x256xf32> to vector<8x256xf32>
    %35 = vector.extract_strided_slice %31 {offsets = [24, 0], sizes = [8, 256], strides = [1, 1]} : vector<64x256xf32> to vector<8x256xf32>
    %36 = vector.extract_strided_slice %31 {offsets = [32, 0], sizes = [8, 256], strides = [1, 1]} : vector<64x256xf32> to vector<8x256xf32>
    %37 = vector.extract_strided_slice %31 {offsets = [40, 0], sizes = [8, 256], strides = [1, 1]} : vector<64x256xf32> to vector<8x256xf32>
    %38 = vector.extract_strided_slice %31 {offsets = [48, 0], sizes = [8, 256], strides = [1, 1]} : vector<64x256xf32> to vector<8x256xf32>
    %39 = vector.extract_strided_slice %31 {offsets = [56, 0], sizes = [8, 256], strides = [1, 1]} : vector<64x256xf32> to vector<8x256xf32>
    %40 = vector.shape_cast %17 : vector<1x256xi1> to vector<1x256xi1>
    %41 = vector.broadcast %40 : vector<1x256xi1> to vector<8x256xi1>
    %42 = arith.select %41, %33, %32 : vector<8x256xi1>, vector<8x256xf32>
    %43 = vector.shape_cast %17 : vector<1x256xi1> to vector<1x256xi1>
    %44 = vector.broadcast %43 : vector<1x256xi1> to vector<8x256xi1>
    %45 = arith.select %44, %35, %34 : vector<8x256xi1>, vector<8x256xf32>
    %46 = vector.shape_cast %17 : vector<1x256xi1> to vector<1x256xi1>
    %47 = vector.broadcast %46 : vector<1x256xi1> to vector<8x256xi1>
    %48 = arith.select %47, %37, %36 : vector<8x256xi1>, vector<8x256xf32>
    %49 = vector.shape_cast %17 : vector<1x256xi1> to vector<1x256xi1>
    %50 = vector.broadcast %49 : vector<1x256xi1> to vector<8x256xi1>
    %51 = arith.select %50, %39, %38 : vector<8x256xi1>, vector<8x256xf32>
    %52 = vector.shape_cast %23 : vector<1x256xi1> to vector<1x256xi1>
    %53 = vector.broadcast %52 : vector<1x256xi1> to vector<8x256xi1>
    %54 = arith.select %53, %45, %42 : vector<8x256xi1>, vector<8x256xf32>
    %55 = vector.shape_cast %23 : vector<1x256xi1> to vector<1x256xi1>
    %56 = vector.broadcast %55 : vector<1x256xi1> to vector<8x256xi1>
    %57 = arith.select %56, %51, %48 : vector<8x256xi1>, vector<8x256xf32>
    %58 = vector.shape_cast %29 : vector<1x256xi1> to vector<1x256xi1>
    %59 = vector.broadcast %58 : vector<1x256xi1> to vector<8x256xi1>
    %60 = arith.select %59, %57, %54 : vector<8x256xi1>, vector<8x256xf32>
    %61 = arith.addf %60, %30 : vector<8x256xf32>
    %62 = arith.negf %61 : vector<8x256xf32>
    %63 = math.exp %62 : vector<8x256xf32>
    %cst_19 = arith.constant 1.000000e+00 : f32
    %64 = vector.broadcast %cst_19 : f32 to vector<8x256xf32>
    %65 = arith.addf %64, %63 : vector<8x256xf32>
    %66 = arith.divf %64, %65 : vector<8x256xf32>
    %67 = arith.mulf %61, %66 : vector<8x256xf32>
    %cst_20 = arith.constant dense<0.000000e+00> : vector<1x256xf32>
    %68 = tpu.matmul %6, %67, %cst_20 {dimension_numbers = #tpu.dot_dimension_numbers<[1], [0], [0], [1], [0, 0, 1, 1], [], []>} : vector<1x8xf32>, vector<8x256xf32>, vector<1x256xf32> -> vector<1x256xf32>
    %69 = arith.negf %68 : vector<1x256xf32>
    %70 = math.exp %69 : vector<1x256xf32>
    %cst_21 = arith.constant 1.000000e+00 : f32
    %71 = vector.broadcast %cst_21 : f32 to vector<1x256xf32>
    %72 = arith.addf %71, %70 : vector<1x256xf32>
    %73 = arith.divf %71, %72 : vector<1x256xf32>
    %74 = vector.broadcast %73 : vector<1x256xf32> to vector<16x256xf32>
    %75 = arith.mulf %1, %74 : vector<16x256xf32>
    %cst_22 = arith.constant dense<0.000000e+00> : vector<16x256xf32>
    %76 = tpu.matmul %7, %75, %cst_22 {dimension_numbers = #tpu.dot_dimension_numbers<[1], [0], [0], [1], [0, 0, 1, 1], [], []>} : vector<16x16xf32>, vector<16x256xf32>, vector<16x256xf32> -> vector<16x256xf32>
    %cst_23 = arith.constant dense<0.000000e+00> : vector<16xf32>
    %77 = vector.multi_reduction <add>, %76, %cst_23 [1] : vector<16x256xf32> to vector<16xf32>
    %78 = vector.shape_cast %77 : vector<16xf32> to vector<16x1xf32>
    %79 = arith.mulf %76, %76 : vector<16x256xf32>
    %cst_24 = arith.constant dense<0.000000e+00> : vector<16xf32>
    %80 = vector.multi_reduction <add>, %79, %cst_24 [1] : vector<16x256xf32> to vector<16xf32>
    %81 = vector.shape_cast %80 : vector<16xf32> to vector<16x1xf32>
    %c0_i32 = arith.constant 0 : i32
    %82 = arith.cmpi eq, %arg2, %c0_i32 : i32
    %83 = arith.extui %82 : i1 to i32
    %c0_i32_25 = arith.constant 0 : i32
    %84 = arith.cmpi ne, %83, %c0_i32_25 : i32
    scf.if %84 {
      %c0_28 = arith.constant 0 : index
      %c0_29 = arith.constant 0 : index
      %c0_30 = arith.constant 0 : index
      %c0_31 = arith.constant 0 : index
      %88 = vector.load %arg9[%c0_28, %c0_29, %c0_30, %c0_31] : memref<1x1x16x1xf32, #tpu.memory_space<vmem>>, vector<1x1x16x1xf32>
      %89 = vector.shape_cast %88 : vector<1x1x16x1xf32> to vector<16x1xf32>
      %90 = vector.shape_cast %78 : vector<16x1xf32> to vector<1x1x16x1xf32>
      tpu.vector_store %arg9[%c0_28, %c0_29, %c0_30, %c0_31], %90 {strides = array<i32>} : memref<1x1x16x1xf32, #tpu.memory_space<vmem>>, vector<1x1x16x1xf32>,
      %c0_32 = arith.constant 0 : index
      %c0_33 = arith.constant 0 : index
      %c0_34 = arith.constant 0 : index
      %c0_35 = arith.constant 0 : index
      %91 = vector.load %arg10[%c0_32, %c0_33, %c0_34, %c0_35] : memref<1x1x16x1xf32, #tpu.memory_space<vmem>>, vector<1x1x16x1xf32>
      %92 = vector.shape_cast %91 : vector<1x1x16x1xf32> to vector<16x1xf32>
      %93 = vector.shape_cast %81 : vector<16x1xf32> to vector<1x1x16x1xf32>
      tpu.vector_store %arg10[%c0_32, %c0_33, %c0_34, %c0_35], %93 {strides = array<i32>} : memref<1x1x16x1xf32, #tpu.memory_space<vmem>>, vector<1x1x16x1xf32>,
    } else {
    }
    %c0_i32_26 = arith.constant 0 : i32
    %85 = arith.cmpi sgt, %arg2, %c0_i32_26 : i32
    %86 = arith.extui %85 : i1 to i32
    %c0_i32_27 = arith.constant 0 : i32
    %87 = arith.cmpi ne, %86, %c0_i32_27 : i32
    scf.if %87 {
      %c0_28 = arith.constant 0 : index
      %c0_29 = arith.constant 0 : index
      %c0_30 = arith.constant 0 : index
      %c0_31 = arith.constant 0 : index
      %88 = vector.load %arg9[%c0_28, %c0_29, %c0_30, %c0_31] : memref<1x1x16x1xf32, #tpu.memory_space<vmem>>, vector<1x1x16x1xf32>
      %89 = vector.shape_cast %88 : vector<1x1x16x1xf32> to vector<16x1xf32>
      %90 = arith.addf %89, %78 : vector<16x1xf32>
      %c0_32 = arith.constant 0 : index
      %c0_33 = arith.constant 0 : index
      %c0_34 = arith.constant 0 : index
      %c0_35 = arith.constant 0 : index
      %91 = vector.load %arg9[%c0_32, %c0_33, %c0_34, %c0_35] : memref<1x1x16x1xf32, #tpu.memory_space<vmem>>, vector<1x1x16x1xf32>
      %92 = vector.shape_cast %91 : vector<1x1x16x1xf32> to vector<16x1xf32>
      %93 = vector.shape_cast %90 : vector<16x1xf32> to vector<1x1x16x1xf32>
      tpu.vector_store %arg9[%c0_32, %c0_33, %c0_34, %c0_35], %93 {strides = array<i32>} : memref<1x1x16x1xf32, #tpu.memory_space<vmem>>, vector<1x1x16x1xf32>,
      %c0_36 = arith.constant 0 : index
      %c0_37 = arith.constant 0 : index
      %c0_38 = arith.constant 0 : index
      %c0_39 = arith.constant 0 : index
      %94 = vector.load %arg10[%c0_36, %c0_37, %c0_38, %c0_39] : memref<1x1x16x1xf32, #tpu.memory_space<vmem>>, vector<1x1x16x1xf32>
      %95 = vector.shape_cast %94 : vector<1x1x16x1xf32> to vector<16x1xf32>
      %96 = arith.addf %95, %81 : vector<16x1xf32>
      %c0_40 = arith.constant 0 : index
      %c0_41 = arith.constant 0 : index
      %c0_42 = arith.constant 0 : index
      %c0_43 = arith.constant 0 : index
      %97 = vector.load %arg10[%c0_40, %c0_41, %c0_42, %c0_43] : memref<1x1x16x1xf32, #tpu.memory_space<vmem>>, vector<1x1x16x1xf32>
      %98 = vector.shape_cast %97 : vector<1x1x16x1xf32> to vector<16x1xf32>
      %99 = vector.shape_cast %96 : vector<16x1xf32> to vector<1x1x16x1xf32>
      tpu.vector_store %arg10[%c0_40, %c0_41, %c0_42, %c0_43], %99 {strides = array<i32>} : memref<1x1x16x1xf32, #tpu.memory_space<vmem>>, vector<1x1x16x1xf32>,
    } else {
    }
    return
  }
  func.func @transform_0(%arg0: i32, %arg1: i32, %arg2: i32) -> (i32, i32, i32) {
    %c2_i32 = arith.constant 2 : i32
    %0 = arith.muli %arg1, %c2_i32 : i32
    %1 = arith.addi %0, %arg2 : i32
    %c0_i32 = arith.constant 0 : i32
    %c0_i32_0 = arith.constant 0 : i32
    return %arg0, %c0_i32, %1 : i32, i32, i32
  }
  func.func @transform_1(%arg0: i32, %arg1: i32, %arg2: i32) -> (i32, i32, i32) {
    %c2_i32 = arith.constant 2 : i32
    %0 = arith.muli %arg1, %c2_i32 : i32
    %1 = arith.addi %0, %arg2 : i32
    %c0_i32 = arith.constant 0 : i32
    %c0_i32_0 = arith.constant 0 : i32
    return %arg0, %c0_i32, %1 : i32, i32, i32
  }
  func.func @transform_2(%arg0: i32, %arg1: i32, %arg2: i32) -> (i32, i32) {
    %c0_i32 = arith.constant 0 : i32
    %c0_i32_0 = arith.constant 0 : i32
    %c0_i32_1 = arith.constant 0 : i32
    return %c0_i32, %c0_i32_0 : i32, i32
  }
  func.func @transform_3(%arg0: i32, %arg1: i32, %arg2: i32) -> (i32, i32) {
    %c0_i32 = arith.constant 0 : i32
    %c0_i32_0 = arith.constant 0 : i32
    %c0_i32_1 = arith.constant 0 : i32
    return %c0_i32, %c0_i32_0 : i32, i32
  }
  func.func @transform_4(%arg0: i32, %arg1: i32, %arg2: i32) -> (i32, i32) {
    %c0_i32 = arith.constant 0 : i32
    %c0_i32_0 = arith.constant 0 : i32
    %c0_i32_1 = arith.constant 0 : i32
    return %c0_i32, %c0_i32_0 : i32, i32
  }
  func.func @transform_5(%arg0: i32, %arg1: i32, %arg2: i32) -> (i32, i32) {
    %c0_i32 = arith.constant 0 : i32
    %c0_i32_0 = arith.constant 0 : i32
    %c0_i32_1 = arith.constant 0 : i32
    return %c0_i32, %c0_i32_0 : i32, i32
  }
  func.func @transform_6(%arg0: i32, %arg1: i32, %arg2: i32) -> (i32, i32, i32, i32) {
    %c0_i32 = arith.constant 0 : i32
    %c0_i32_0 = arith.constant 0 : i32
    %c0_i32_1 = arith.constant 0 : i32
    return %arg0, %arg1, %c0_i32, %c0_i32_0 : i32, i32, i32, i32
  }
  func.func @transform_7(%arg0: i32, %arg1: i32, %arg2: i32) -> (i32, i32, i32, i32) {
    %c0_i32 = arith.constant 0 : i32
    %c0_i32_0 = arith.constant 0 : i32
    %c0_i32_1 = arith.constant 0 : i32
    return %arg0, %arg1, %c0_i32, %c0_i32_0 : i32, i32, i32, i32
  }
}

</mosaic_0001>

<llo_original>
// kernel: tpu_custom_call.1
$region0: #{tpu_custom_call.1}
  #allocation0 [shape = 'u32[]', space=smem, size = 0x4, offset = 0x4, fixed_abs, tag = 'smem constant byte address 0x4 - core index']
  #allocation1 [shape = 'u32[144,128]{1,0:T(1,128)}', space=vmem, size = 0x12000, scoped, tag = 'internal scratch']
  %s0 = inlined_call_operand.hbm [shape: f32[2,16,1024], index: 0, kind: input, shape index: {}]
  %s1 = inlined_call_operand.hbm [shape: f32[2,8,1024], index: 1, kind: input, shape index: {}]
  %s2 = inlined_call_operand.vmem [shape: f32[8,16], index: 2, kind: input, shape index: {}]
  %s3 = inlined_call_operand.vmem [shape: f32[64,8], index: 3, kind: input, shape index: {}]
  %s4 = inlined_call_operand.vmem [shape: f32[1,8], index: 4, kind: input, shape index: {}]
  %s5 = inlined_call_operand.vmem [shape: f32[16,16], index: 5, kind: input, shape index: {}]
  %s6 = inlined_call_operand.vmem [shape: f32[2,2,16,1], index: 6, kind: output, shape index: {0}]
  %s7 = inlined_call_operand.vmem [shape: f32[2,2,16,1], index: 7, kind: output, shape index: {1}]
  %8 = xla_tuple %s6, %s7
  %s9 = sld [smem:[#allocation0]]
  $region81: #{tpu_custom_call.1} parent=0
    _
  %s11 = ssub.s32 1, %s9
  %s12 = scalar_select 0, %s11, %s9
  $region1: #{tpu_custom_call.1} parent=0
    #allocation2 [shape = 'u8[32768]{0}', space=vmem, size = 0x8000, scoped, tag = 'input window, operand 0']
    #allocation3 [shape = 's32[2]{0}', space=sflag, size = 0x8, scoped, tag = 'scoped memory for tpu_custom_call.1']
    #allocation4 [shape = 'u8[16384]{0}', space=vmem, size = 0x4000, scoped, tag = 'input window, operand 1']
    #allocation5 [shape = 's32[2]{0}', space=sflag, size = 0x8, scoped, tag = 'scoped memory for tpu_custom_call.1']
    %13 = vsyncpa [#allocation3], 0
    %s14 = scalar_lea.sflag [#allocation3], 1
    %15 = vsyncpa %s14, 0
    %16 = vsyncpa [#allocation5], 0
    %s17 = scalar_lea.sflag [#allocation5], 1
    %18 = vsyncpa %s17, 0
    loop: start=0, step=1, limit=10
    $region2: #{tpu_custom_call.1} parent=1 // loop_pre_header
      _
    $region3: #{tpu_custom_call.1} parent=1 // loop_header
      %s20 = sphi 0, %s24
      %p21 = scmp.ge.s32.totalorder %s20, 10
      %s27 = sphi 0, %s46
      %s28 = sphi 0, %s42
      %s29 = sphi 0, %s38
      %s30 = sphi 0, %s27
      %s31 = sphi 0, %s28
      %s32 = sphi 0, %s29
      %s33 = sphi 0, %s30
      %s34 = sphi 0, %s31
      %s35 = sphi 0, %s32
      %s55 = sphi 0, %s57
      %s58 = sphi 0, %s55
      %s59 = sphi 0, %s58
      %s75 = sphi 0, %s59
      %s87 = sphi 0, %s89
      %s90 = sphi 0, %s87
      %s91 = sphi 0, %s90
      %s107 = sphi 0, %s91
      %s111 = sphi 0, %s111
      %s113 = sphi 0, %s111
      %s114 = sphi 0, %s113
      %s128 = sphi 0, %s114
      %s132 = sphi 0, %s132
      %s134 = sphi 0, %s132
      %s135 = sphi 0, %s134
      %s149 = sphi 0, %s135
      %s153 = sphi 0, %s153
      %s155 = sphi 0, %s153
      %s156 = sphi 0, %s155
      %s170 = sphi 0, %s156
      %s174 = sphi 0, %s174
      %s176 = sphi 0, %s174
      %s177 = sphi 0, %s176
      %s191 = sphi 0, %s177
      %s199 = sphi 0, %s201
      %s202 = sphi 0, %s199
      %s203 = sphi 0, %s202
      %s219 = sphi 0, %s203
      %s227 = sphi 0, %s229
      %s230 = sphi 0, %s227
      %s231 = sphi 0, %s230
      %s247 = sphi 0, %s231
    $region4: #{tpu_custom_call.1} parent=1 // loop_header_branch
      %23 = sbr.rel (%p21) target = $region8
    $region5: #{tpu_custom_call.1} parent=1 // loop_body
      %s25 = ssub.s32 %s20, 1
      %s26 = ssub.s32 %s20, 2
      %s36 = sadd.s32 1, %s29
      %p37 = scmp.ge.s32.totalorder %s36, 2
      %s38 = scalar_select %p37, 0, %s36
      %s39 = sadd.s32 1, %s28
      %s40 = scalar_select %p37, %s39, %s28
      %p41 = scmp.ge.s32.totalorder %s40, 2
      %s42 = scalar_select %p41, 0, %s40
      %s43 = sadd.s32 1, %s27
      %s44 = scalar_select %p41, %s43, %s27
      %p45 = scmp.ge.s32.totalorder %s44, 2
      %s46 = scalar_select %p45, 0, %s44
      %s47 = smul.u32 %s28, 2
      %s48 = sadd.s32 %s47, %s29
      %s49 = smul.u32 %s42, 2
      %s50 = sadd.s32 %s49, %s38
      %s51 = ssub.s32 %s27, %s46
      %s52 = ssub.s32 %s48, %s50
      %s53 = sor.u32 %s51, %s52
      %p54 = scmp.eq.s32.totalorder %s53, 0
      %s56 = sadd.s32 %s55, 1
      %s57 = scalar_select %p54, %s55, %s56
      %p60 = pneg %p54
      %p61 = scmp.eq.s32.totalorder %s20, 7
      %p62 = por %p60, %p61
      %p63 = scmp.ne.s32.totalorder %s55, %s58
      %p64 = scmp.eq.s32.totalorder %s20, 0
      %p65 = por %p63, %p64
      %p66 = scmp.ne.s32.totalorder %s55, %s58
      %p67 = scmp.eq.s32.totalorder %s25, 7
      %p68 = por %p66, %p67
      %p69 = scmp.ne.s32.totalorder %s58, %s59
      %p70 = scmp.eq.s32.totalorder %s25, 0
      %p71 = por %p69, %p70
      %p72 = scmp.ne.s32.totalorder %s58, %s59
      %p73 = scmp.eq.s32.totalorder %s26, 7
      %p74 = por %p72, %p73
      %p76 = scmp.ne.s32.totalorder %s59, %s75
      %p77 = scmp.eq.s32.totalorder %s26, 0
      %p78 = por %p76, %p77
      %s79 = smul.u32 %s28, 2
      %s80 = sadd.s32 %s79, %s29
      %s81 = smul.u32 %s42, 2
      %s82 = sadd.s32 %s81, %s38
      %s83 = ssub.s32 %s27, %s46
      %s84 = ssub.s32 %s80, %s82
      %s85 = sor.u32 %s83, %s84
      %p86 = scmp.eq.s32.totalorder %s85, 0
      %s88 = sadd.s32 %s87, 1
      %s89 = scalar_select %p86, %s87, %s88
      %p92 = pneg %p86
      %p93 = scmp.eq.s32.totalorder %s20, 7
      %p94 = por %p92, %p93
      %p95 = scmp.ne.s32.totalorder %s87, %s90
      %p96 = scmp.eq.s32.totalorder %s20, 0
      %p97 = por %p95, %p96
      %p98 = scmp.ne.s32.totalorder %s87, %s90
      %p99 = scmp.eq.s32.totalorder %s25, 7
      %p100 = por %p98, %p99
      %p101 = scmp.ne.s32.totalorder %s90, %s91
      %p102 = scmp.eq.s32.totalorder %s25, 0
      %p103 = por %p101, %p102
      %p104 = scmp.ne.s32.totalorder %s90, %s91
      %p105 = scmp.eq.s32.totalorder %s26, 7
      %p106 = por %p104, %p105
      %p108 = scmp.ne.s32.totalorder %s91, %s107
      %p109 = scmp.eq.s32.totalorder %s26, 0
      %p110 = por %p108, %p109
      %s112 = sadd.s32 %s111, 1
      %p115 = scmp.eq.s32.totalorder %s20, 7
      %p116 = scmp.ne.s32.totalorder %s111, %s113
      %p117 = scmp.eq.s32.totalorder %s20, 0
      %p118 = por %p116, %p117
      %p119 = scmp.ne.s32.totalorder %s111, %s113
      %p120 = scmp.eq.s32.totalorder %s25, 7
      %p121 = por %p119, %p120
      %p122 = scmp.ne.s32.totalorder %s113, %s114
      %p123 = scmp.eq.s32.totalorder %s25, 0
      %p124 = por %p122, %p123
      %p125 = scmp.ne.s32.totalorder %s113, %s114
      %p126 = scmp.eq.s32.totalorder %s26, 7
      %p127 = por %p125, %p126
      %p129 = scmp.ne.s32.totalorder %s114, %s128
      %p130 = scmp.eq.s32.totalorder %s26, 0
      %p131 = por %p129, %p130
      %s133 = sadd.s32 %s132, 1
      %p136 = scmp.eq.s32.totalorder %s20, 7
      %p137 = scmp.ne.s32.totalorder %s132, %s134
      %p138 = scmp.eq.s32.totalorder %s20, 0
      %p139 = por %p137, %p138
      %p140 = scmp.ne.s32.totalorder %s132, %s134
      %p141 = scmp.eq.s32.totalorder %s25, 7
      %p142 = por %p140, %p141
      %p143 = scmp.ne.s32.totalorder %s134, %s135
      %p144 = scmp.eq.s32.totalorder %s25, 0
      %p145 = por %p143, %p144
      %p146 = scmp.ne.s32.totalorder %s134, %s135
      %p147 = scmp.eq.s32.totalorder %s26, 7
      %p148 = por %p146, %p147
      %p150 = scmp.ne.s32.totalorder %s135, %s149
      %p151 = scmp.eq.s32.totalorder %s26, 0
      %p152 = por %p150, %p151
      %s154 = sadd.s32 %s153, 1
      %p157 = scmp.eq.s32.totalorder %s20, 7
      %p158 = scmp.ne.s32.totalorder %s153, %s155
      %p159 = scmp.eq.s32.totalorder %s20, 0
      %p160 = por %p158, %p159
      %p161 = scmp.ne.s32.totalorder %s153, %s155
      %p162 = scmp.eq.s32.totalorder %s25, 7
      %p163 = por %p161, %p162
      %p164 = scmp.ne.s32.totalorder %s155, %s156
      %p165 = scmp.eq.s32.totalorder %s25, 0
      %p166 = por %p164, %p165
      %p167 = scmp.ne.s32.totalorder %s155, %s156
      %p168 = scmp.eq.s32.totalorder %s26, 7
      %p169 = por %p167, %p168
      %p171 = scmp.ne.s32.totalorder %s156, %s170
      %p172 = scmp.eq.s32.totalorder %s26, 0
      %p173 = por %p171, %p172
      %s175 = sadd.s32 %s174, 1
      %p178 = scmp.eq.s32.totalorder %s20, 7
      %p179 = scmp.ne.s32.totalorder %s174, %s176
      %p180 = scmp.eq.s32.totalorder %s20, 0
      %p181 = por %p179, %p180
      %p182 = scmp.ne.s32.totalorder %s174, %s176
      %p183 = scmp.eq.s32.totalorder %s25, 7
      %p184 = por %p182, %p183
      %p185 = scmp.ne.s32.totalorder %s176, %s177
      %p186 = scmp.eq.s32.totalorder %s25, 0
      %p187 = por %p185, %p186
      %p188 = scmp.ne.s32.totalorder %s176, %s177
      %p189 = scmp.eq.s32.totalorder %s26, 7
      %p190 = por %p188, %p189
      %p192 = scmp.ne.s32.totalorder %s177, %s191
      %p193 = scmp.eq.s32.totalorder %s26, 0
      %p194 = por %p192, %p193
      %s195 = ssub.s32 %s27, %s46
      %s196 = ssub.s32 %s28, %s42
      %s197 = sor.u32 %s195, %s196
      %p198 = scmp.eq.s32.totalorder %s197, 0
      %s200 = sadd.s32 %s199, 1
      %s201 = scalar_select %p198, %s199, %s200
      %p204 = pneg %p198
      %p205 = scmp.eq.s32.totalorder %s20, 7
      %p206 = por %p204, %p205
      %p207 = scmp.ne.s32.totalorder %s199, %s202
      %p208 = scmp.eq.s32.totalorder %s20, 0
      %p209 = por %p207, %p208
      %p210 = scmp.ne.s32.totalorder %s199, %s202
      %p211 = scmp.eq.s32.totalorder %s25, 7
      %p212 = por %p210, %p211
      %p213 = scmp.ne.s32.totalorder %s202, %s203
      %p214 = scmp.eq.s32.totalorder %s25, 0
      %p215 = por %p213, %p214
      %p216 = scmp.ne.s32.totalorder %s202, %s203
      %p217 = scmp.eq.s32.totalorder %s26, 7
      %p218 = por %p216, %p217
      %p220 = scmp.ne.s32.totalorder %s203, %s219
      %p221 = scmp.eq.s32.totalorder %s26, 0
      %p222 = por %p220, %p221
      %s223 = ssub.s32 %s27, %s46
      %s224 = ssub.s32 %s28, %s42
      %s225 = sor.u32 %s223, %s224
      %p226 = scmp.eq.s32.totalorder %s225, 0
      %s228 = sadd.s32 %s227, 1
      %s229 = scalar_select %p226, %s227, %s228
      %p232 = pneg %p226
      %p233 = scmp.eq.s32.totalorder %s20, 7
      %p234 = por %p232, %p233
      %p235 = scmp.ne.s32.totalorder %s227, %s230
      %p236 = scmp.eq.s32.totalorder %s20, 0
      %p237 = por %p235, %p236
      %p238 = scmp.ne.s32.totalorder %s227, %s230
      %p239 = scmp.eq.s32.totalorder %s25, 7
      %p240 = por %p238, %p239
      %p241 = scmp.ne.s32.totalorder %s230, %s231
      %p242 = scmp.eq.s32.totalorder %s25, 0
      %p243 = por %p241, %p242
      %p244 = scmp.ne.s32.totalorder %s230, %s231
      %p245 = scmp.eq.s32.totalorder %s26, 7
      %p246 = por %p244, %p245
      %p248 = scmp.ne.s32.totalorder %s231, %s247
      %p249 = scmp.eq.s32.totalorder %s26, 0
      %p250 = por %p248, %p249
      %p251 = scmp.le.s32.totalorder 1, %s20
      %p252 = scmp.lt.s32.totalorder %s20, 9
      %p253 = pnand %p251, %p252
      %p254 = pneg %p253
      // Predicated region
      $region9: #{tpu_custom_call.1} parent=5 // pred_check
        _
      $region10: #{tpu_custom_call.1} parent=5 // pred_check_branch
        %256 = sbr.rel (%p253) target = $region12
      $region11: #{tpu_custom_call.1} parent=5 // pred_region
        %s257 = ssub.s32 %s20, 1
        // Predicated region
        $region13: #{tpu_custom_call.1} parent=11 // pred_check
          %p258 = pneg %p124
        $region14: #{tpu_custom_call.1} parent=11 // pred_check_branch
          %260 = sbr.rel (%p258) target = $region16
        $region15: #{tpu_custom_call.1} parent=11 // pred_region
          _
        $region16: #{tpu_custom_call.1} parent=11 // pred_fallthru
          _
        // Predicated region
        $region17: #{tpu_custom_call.1} parent=11 // pred_check
          %p261 = pneg %p145
        $region18: #{tpu_custom_call.1} parent=11 // pred_check_branch
          %263 = sbr.rel (%p261) target = $region20
        $region19: #{tpu_custom_call.1} parent=11 // pred_region
          _
        $region20: #{tpu_custom_call.1} parent=11 // pred_fallthru
          _
        // Predicated region
        $region21: #{tpu_custom_call.1} parent=11 // pred_check
          %p264 = pneg %p166
        $region22: #{tpu_custom_call.1} parent=11 // pred_check_branch
          %266 = sbr.rel (%p264) target = $region24
        $region23: #{tpu_custom_call.1} parent=11 // pred_region
          _
        $region24: #{tpu_custom_call.1} parent=11 // pred_fallthru
          _
        // Predicated region
        $region25: #{tpu_custom_call.1} parent=11 // pred_check
          %p267 = pneg %p187
        $region26: #{tpu_custom_call.1} parent=11 // pred_check_branch
          %269 = sbr.rel (%p267) target = $region28
        $region27: #{tpu_custom_call.1} parent=11 // pred_region
          _
        $region28: #{tpu_custom_call.1} parent=11 // pred_fallthru
          _
      $region12: #{tpu_custom_call.1} parent=5 // pred_fallthru
        _
      %p270 = scmp.lt.s32.totalorder %s20, 8
      // Predicated region
      $region29: #{tpu_custom_call.1} parent=5 // pred_check
        %p271 = pneg %p270
      $region30: #{tpu_custom_call.1} parent=5 // pred_check_branch
        %273 = sbr.rel (%p271) target = $region32
      $region31: #{tpu_custom_call.1} parent=5 // pred_region
        // Predicated region
        $region33: #{tpu_custom_call.1} parent=31 // pred_check
          %p274 = pneg %p65
        $region34: #{tpu_custom_call.1} parent=31 // pred_check_branch
          %276 = sbr.rel (%p274) target = $region36
        $region35: #{tpu_custom_call.1} parent=31 // pred_region
          %s277 = sand.u32 %s55, 1
          %s278 = scalar_lea.sflag [#allocation3], %s277
          %s279 = sand.u32 %s55, 1
          %s280 = smul.addr %s279, 32
          %s281 = scalar_lea.vmem [#allocation2], %s280
          %s282 = smul.u32 %s28, 2
          %s283 = sadd.s32 %s282, %s29
          %s284 = smul.u32 2, %s283
          %s286 = ssub.s32 512, 512
          %287 = vsyncadd %s278, %s286
          %s288 = smul.addr %s27, 16
          %s289 = sadd.s32 %s284, %s288
          %s290 = smul.addr %s289, 128
          %s291 = scalar_lea.hbm %s0, %s290
          %s292 = sshll.u32 %s281, 4
          %s293 = int_to_ptr.vmem [resolvable:$true] %s292
          %298 = dma.hbm_to_vmem [thread:$0]  %s291, 512, %s293, %s278, 1024, 256, 16
        $region36: #{tpu_custom_call.1} parent=31 // pred_fallthru
          _
        // Predicated region
        $region37: #{tpu_custom_call.1} parent=31 // pred_check
          %p299 = pneg %p97
        $region38: #{tpu_custom_call.1} parent=31 // pred_check_branch
          %301 = sbr.rel (%p299) target = $region40
        $region39: #{tpu_custom_call.1} parent=31 // pred_region
          %s302 = sand.u32 %s87, 1
          %s303 = scalar_lea.sflag [#allocation5], %s302
          %s304 = sand.u32 %s87, 1
          %s305 = smul.addr %s304, 16
          %s306 = scalar_lea.vmem [#allocation4], %s305
          %s307 = smul.u32 %s28, 2
          %s308 = sadd.s32 %s307, %s29
          %s309 = smul.u32 2, %s308
          %s311 = ssub.s32 256, 256
          %312 = vsyncadd %s303, %s311
          %s313 = smul.addr %s27, 8
          %s314 = sadd.s32 %s309, %s313
          %s315 = smul.addr %s314, 128
          %s316 = scalar_lea.hbm %s1, %s315
          %s318 = sshll.u32 %s306, 4
          %s319 = int_to_ptr.vmem [resolvable:$true] %s318
          %321 = dma.hbm_to_vmem [thread:$0]  %s316, 256, %s319, %s303
        $region40: #{tpu_custom_call.1} parent=31 // pred_fallthru
          _
      $region32: #{tpu_custom_call.1} parent=5 // pred_fallthru
        _
      %p322 = scmp.le.s32.totalorder 1, %s20
      %p323 = scmp.lt.s32.totalorder %s20, 9
      %p324 = pnand %p322, %p323
      %p325 = pneg %p324
      // Predicated region
      $region41: #{tpu_custom_call.1} parent=5 // pred_check
        _
      $region42: #{tpu_custom_call.1} parent=5 // pred_check_branch
        %327 = sbr.rel (%p324) target = $region44
      $region43: #{tpu_custom_call.1} parent=5 // pred_region
        %s328 = ssub.s32 %s20, 1
        %s329 = sand.u32 %s58, 1
        %s330 = scalar_lea.sflag [#allocation3], %s329
        %s331 = sand.u32 %s58, 1
        %s332 = smul.addr %s331, 32
        %s333 = scalar_lea.vmem [#allocation2], %s332
        // Predicated region
        $region45: #{tpu_custom_call.1} parent=43 // pred_check
          %p334 = pneg %p71
        $region46: #{tpu_custom_call.1} parent=43 // pred_check_branch
          %336 = sbr.rel (%p334) target = $region48
        $region47: #{tpu_custom_call.1} parent=43 // pred_region
          %337 = dma.done %s330, 512
        $region48: #{tpu_custom_call.1} parent=43 // pred_fallthru
          _
        %s338 = sand.u32 %s90, 1
        %s339 = scalar_lea.sflag [#allocation5], %s338
        %s340 = sand.u32 %s90, 1
        %s341 = smul.addr %s340, 16
        %s342 = scalar_lea.vmem [#allocation4], %s341
        // Predicated region
        $region49: #{tpu_custom_call.1} parent=43 // pred_check
          %p343 = pneg %p103
        $region50: #{tpu_custom_call.1} parent=43 // pred_check_branch
          %345 = sbr.rel (%p343) target = $region52
        $region51: #{tpu_custom_call.1} parent=43 // pred_region
          %346 = dma.done %s339, 256
        $region52: #{tpu_custom_call.1} parent=43 // pred_fallthru
          _
        %s347 = sand.u32 %s58, 1
        %s348 = scalar_lea.sflag [#allocation3], %s347
        %s349 = sand.u32 %s58, 1
        %s350 = smul.addr %s349, 32
        %s351 = scalar_lea.vmem [#allocation2], %s350
        %p352 = pneg %p71
        %p353 = pneg %p68
        %s354 = sand.u32 %s90, 1
        %s355 = scalar_lea.sflag [#allocation5], %s354
        %s356 = sand.u32 %s90, 1
        %s357 = smul.addr %s356, 16
        %s358 = scalar_lea.vmem [#allocation4], %s357
        %p359 = pneg %p103
        %p360 = pneg %p100
        %p361 = pneg %p124
        %p362 = pneg %p121
        %p363 = pneg %p145
        %p364 = pneg %p142
        %p365 = pneg %p166
        %p366 = pneg %p163
        %p367 = pneg %p187
        %p368 = pneg %p184
        %p369 = pneg %p215
        %p370 = pneg %p212
        %p371 = scmp.lt.s32.totalorder %s30, 1
        %s372 = scalar_select %p371, %s30, 1
        %p373 = scmp.lt.s32.totalorder %s31, 1
        %s374 = scalar_select %p373, %s31, 1
        %s375 = smul.addr %s374, 2
        %s376 = smul.addr %s372, 4
        %s377 = sadd.s32 %s375, %s376
        %s378 = smul.addr %s377, 8
        %s379 = scalar_lea.vmem %s6, %s378
        %p380 = pneg %p243
        %p381 = pneg %p240
        %p382 = scmp.lt.s32.totalorder %s30, 1
        %s383 = scalar_select %p382, %s30, 1
        %p384 = scmp.lt.s32.totalorder %s31, 1
        %s385 = scalar_select %p384, %s31, 1
        %s386 = smul.addr %s385, 2
        %s387 = smul.addr %s383, 4
        %s388 = sadd.s32 %s386, %s387
        %s389 = smul.addr %s388, 8
        %s390 = scalar_lea.vmem %s7, %s389
        %s391 = smul.u32 %s31, 2
        %s392 = sadd.s32 %s391, %s32
        %s393 = smul.u32 2, %s392
        %s394 = smul.u32 %s31, 2
        %s395 = sadd.s32 %s394, %s32
        %s396 = smul.u32 2, %s395
        %p397 = scmp.lt.s32.totalorder %s30, 1
        %s398 = scalar_select %p397, %s30, 1
        %p399 = scmp.lt.s32.totalorder %s31, 1
        %s400 = scalar_select %p399, %s31, 1
        %s401 = smul.addr %s400, 2
        %s402 = smul.addr %s398, 4
        %s403 = sadd.s32 %s401, %s402
        %s404 = smul.addr %s403, 8
        %s405 = scalar_lea.vmem %s6, %s404
        %p406 = scmp.lt.s32.totalorder %s30, 1
        %s407 = scalar_select %p406, %s30, 1
        %p408 = scmp.lt.s32.totalorder %s31, 1
        %s409 = scalar_select %p408, %s31, 1
        %s410 = smul.addr %s409, 2
        %s411 = smul.addr %s407, 4
        %s412 = sadd.s32 %s410, %s411
        %s413 = smul.addr %s412, 8
        %s414 = scalar_lea.vmem %s7, %s413
        %v415 = vld [vmem:[%s333] sm:$0xff]
        %v416 = vld [vmem:[%s333 + $0x8] sm:$0xff]
        %v417 = vld [vmem:[%s333 + $0x10] sm:$0xff]
        %v418 = vld [vmem:[%s333 + $0x18] sm:$0xff]
        %v419 = vld [vmem:[%s342] sm:$0xff]
        %v420 = vld [vmem:[%s342 + $0x8] sm:$0xff]
        %v421 = vld [vmem:[%s2] sm:$0xff]
        %v422 = vld [vmem:[%s3] sm:$0xff]
        %v423 = vld [vmem:[%s3 + $0x8] sm:$0xff]
        %v424 = vld [vmem:[%s3 + $0x10] sm:$0xff]
        %v425 = vld [vmem:[%s3 + $0x18] sm:$0xff]
        %v426 = vld [vmem:[%s3 + $0x20] sm:$0xff]
        %v427 = vld [vmem:[%s3 + $0x28] sm:$0xff]
        %v428 = vld [vmem:[%s3 + $0x30] sm:$0xff]
        %v429 = vld [vmem:[%s3 + $0x38] sm:$0xff]
        %v430 = vld [vmem:[%s4] sm:$0x1]
        %v431 = vld [vmem:[%s5] sm:$0xff]
        %v432 = vld [vmem:[%s5 + $0x8] sm:$0xff]
        %s433 = smul.u32 %s31, 2
        %s434 = sadd.s32 %s433, %s32
        %v435 = vlaneseq
        %v436 = vand.u32 %v435, 127
        %v437 = vadd.s32 %v436, 128
        %s438 = smul.u32 %s434, 256
        %v439 = vstv %s438
        %v440 = vadd.s32 %v436, %v439
        %v441 = vadd.s32 %v437, %v439
        %v442 = vand.u32 %v440, 1
        %v443 = vand.u32 %v441, 1
        %vm444 = vcmp.eq.s32.totalorder %v442, 1
        %vm445 = vcmp.eq.s32.totalorder %v443, 1
        %v446 = vshra.s32 %v440, 4
        %v447 = vshra.s32 %v441, 4
        %v448 = vand.u32 %v446, 1
        %v449 = vand.u32 %v447, 1
        %vm450 = vcmp.eq.s32.totalorder %v448, 1
        %vm451 = vcmp.eq.s32.totalorder %v449, 1
        %v452 = vshra.s32 %v440, 8
        %v453 = vshra.s32 %v441, 8
        %v454 = vand.u32 %v452, 1
        %v455 = vand.u32 %v453, 1
        %vm456 = vcmp.eq.s32.totalorder %v454, 1
        %vm457 = vcmp.eq.s32.totalorder %v455, 1
        %vm458 = vcmask 130048
        %v460 = vsel %vm458, %v421, 0
        %462 = vmatprep.subr.mxu0 %v416
        %463 = vmatpush1.msra.mxu0 %v415
        %464 = vmatprep.subr.mxu0 %v418
        %465 = vmatpush1.msra.mxu0 %v417
        %466 = vmatprep.subr.mxu0 0.0
        %467 = vmatpush1.msra.mxu0 0.0
        %468 = vmatprep.subr.mxu0 0.0
        %469 = vmatpush1.msra.mxu0 0.0
        %470 = vmatprep.subr.mxu0 0.0
        %471 = vmatpush1.msra.mxu0 0.0
        %472 = vmatprep.subr.mxu0 0.0
        %473 = vmatpush1.msra.mxu0 0.0
        %474 = vmatprep.subr.mxu0 0.0
        %475 = vmatpush1.msra.mxu0 0.0
        %476 = vmatprep.subr.mxu0 0.0
        %477 = vmatpush1.msra.mxu0 0.0
        %478 = vmatprep.subr.mxu0 0.0
        %479 = vmatpush1.msra.mxu0 0.0
        %480 = vmatprep.subr.mxu0 0.0
        %481 = vmatpush1.msra.mxu0 0.0
        %482 = vmatprep.subr.mxu0 0.0
        %483 = vmatpush1.msra.mxu0 0.0
        %484 = vmatprep.subr.mxu0 0.0
        %485 = vmatpush1.msra.mxu0 0.0
        %486 = vmatprep.subr.mxu0 0.0
        %487 = vmatpush1.msra.mxu0 0.0
        %488 = vmatprep.subr.mxu0 0.0
        %489 = vmatpush1.msra.mxu0 0.0
        %490 = vmatprep.subr.mxu0 0.0
        %491 = vmatpush1.msra.mxu0 0.0
        %492 = vmatprep.subr.mxu0 0.0
        %493 = vmatpush1.msra.mxu0 0.0
        %494 = vmatprep.subr.mxu0 0.0
        %495 = vmatpush1.msra.mxu0 0.0
        %496 = vmatprep.subr.mxu0 0.0
        %497 = vmatpush1.msra.mxu0 0.0
        %498 = vmatprep.subr.mxu0 0.0
        %499 = vmatpush1.msra.mxu0 0.0
        %500 = vmatprep.subr.mxu0 0.0
        %501 = vmatpush1.msra.mxu0 0.0
        %502 = vmatprep.subr.mxu0 0.0
        %503 = vmatpush1.msra.mxu0 0.0
        %504 = vmatprep.subr.mxu0 0.0
        %505 = vmatpush1.msra.mxu0 0.0
        %506 = vmatprep.subr.mxu0 0.0
        %507 = vmatpush1.msra.mxu0 0.0
        %508 = vmatprep.subr.mxu0 0.0
        %509 = vmatpush1.msra.mxu0 0.0
        %510 = vmatprep.subr.mxu0 0.0
        %511 = vmatpush1.msra.mxu0 0.0
        %512 = vmatprep.subr.mxu0 0.0
        %513 = vmatpush1.msra.mxu0 0.0
        %514 = vmatprep.subr.mxu0 0.0
        %515 = vmatpush1.msra.mxu0 0.0
        %516 = vmatprep.subr.mxu0 0.0
        %517 = vmatpush1.msra.mxu0 0.0
        %518 = vmatprep.subr.mxu0 0.0
        %519 = vmatpush1.msra.mxu0 0.0
        %520 = vmatprep.subr.mxu0 0.0
        %521 = vmatpush1.msra.mxu0 0.0
        %522 = vmatprep.subr.mxu0 0.0
        %523 = vmatpush1.msra.mxu0 0.0
        %524 = vmatprep.subr.mxu0 0.0
        %525 = vmatpush1.msra.mxu0 0.0
        %526 = vmatprep.mubr.f32.mxu0 0.0
        %527 = vmatmul.mubr.f32.gmra.mrb[0].mxu0 %v460
        %v528 = vpop.f32.mrb[0].mxu0
        %v529 = vadd.f32 0.0, %v528
        %v530 = vpop.f32.mrb[0].mxu0
        %v531 = vadd.f32 0.0, %v530
        %532 = vdwg.mxu0
        %vm533 = vcmask 64512
        %v535 = vsel %vm533, %v422, 0
        %v538 = vsel %vm533, %v423, 0
        %v541 = vsel %vm533, %v424, 0
        %v544 = vsel %vm533, %v425, 0
        %v547 = vsel %vm533, %v426, 0
        %v550 = vsel %vm533, %v427, 0
        %v553 = vsel %vm533, %v428, 0
        %v556 = vsel %vm533, %v429, 0
        %558 = vmatprep.subr.mxu0 %v420
        %559 = vmatpush1.msra.mxu0 %v419
        %560 = vmatprep.subr.mxu0 0.0
        %561 = vmatpush1.msra.mxu0 0.0
        %562 = vmatprep.subr.mxu0 0.0
        %563 = vmatpush1.msra.mxu0 0.0
        %564 = vmatprep.subr.mxu0 0.0
        %565 = vmatpush1.msra.mxu0 0.0
        %566 = vmatprep.subr.mxu0 0.0
        %567 = vmatpush1.msra.mxu0 0.0
        %568 = vmatprep.subr.mxu0 0.0
        %569 = vmatpush1.msra.mxu0 0.0
        %570 = vmatprep.subr.mxu0 0.0
        %571 = vmatpush1.msra.mxu0 0.0
        %572 = vmatprep.subr.mxu0 0.0
        %573 = vmatpush1.msra.mxu0 0.0
        %574 = vmatprep.subr.mxu0 0.0
        %575 = vmatpush1.msra.mxu0 0.0
        %576 = vmatprep.subr.mxu0 0.0
        %577 = vmatpush1.msra.mxu0 0.0
        %578 = vmatprep.subr.mxu0 0.0
        %579 = vmatpush1.msra.mxu0 0.0
        %580 = vmatprep.subr.mxu0 0.0
        %581 = vmatpush1.msra.mxu0 0.0
        %582 = vmatprep.subr.mxu0 0.0
        %583 = vmatpush1.msra.mxu0 0.0
        %584 = vmatprep.subr.mxu0 0.0
        %585 = vmatpush1.msra.mxu0 0.0
        %586 = vmatprep.subr.mxu0 0.0
        %587 = vmatpush1.msra.mxu0 0.0
        %588 = vmatprep.subr.mxu0 0.0
        %589 = vmatpush1.msra.mxu0 0.0
        %590 = vmatprep.subr.mxu0 0.0
        %591 = vmatpush1.msra.mxu0 0.0
        %592 = vmatprep.subr.mxu0 0.0
        %593 = vmatpush1.msra.mxu0 0.0
        %594 = vmatprep.subr.mxu0 0.0
        %595 = vmatpush1.msra.mxu0 0.0
        %596 = vmatprep.subr.mxu0 0.0
        %597 = vmatpush1.msra.mxu0 0.0
        %598 = vmatprep.subr.mxu0 0.0
        %599 = vmatpush1.msra.mxu0 0.0
        %600 = vmatprep.subr.mxu0 0.0
        %601 = vmatpush1.msra.mxu0 0.0
        %602 = vmatprep.subr.mxu0 0.0
        %603 = vmatpush1.msra.mxu0 0.0
        %604 = vmatprep.subr.mxu0 0.0
        %605 = vmatpush1.msra.mxu0 0.0
        %606 = vmatprep.subr.mxu0 0.0
        %607 = vmatpush1.msra.mxu0 0.0
        %608 = vmatprep.subr.mxu0 0.0
        %609 = vmatpush1.msra.mxu0 0.0
        %610 = vmatprep.subr.mxu0 0.0
        %611 = vmatpush1.msra.mxu0 0.0
        %612 = vmatprep.subr.mxu0 0.0
        %613 = vmatpush1.msra.mxu0 0.0
        %614 = vmatprep.subr.mxu0 0.0
        %615 = vmatpush1.msra.mxu0 0.0
        %616 = vmatprep.subr.mxu0 0.0
        %617 = vmatpush1.msra.mxu0 0.0
        %618 = vmatprep.subr.mxu0 0.0
        %619 = vmatpush1.msra.mxu0 0.0
        %620 = vmatprep.subr.mxu0 0.0
        %621 = vmatpush1.msra.mxu0 0.0
        %622 = vmatprep.mubr.f32.mxu0 0.0
        %623 = vmatmul.mubr.f32.gmra.mrb[0].mxu0 %v535
        %v624 = vpop.f32.mrb[0].mxu0
        %v625 = vadd.f32 0.0, %v624
        %v626 = vpop.f32.mrb[0].mxu0
        %v627 = vadd.f32 0.0, %v626
        %628 = vmatprep.mubr.f32.mxu0 0.0
        %629 = vmatmul.mubr.f32.gmra.mrb[0].mxu0 %v538
        %v630 = vpop.f32.mrb[0].mxu0
        %v631 = vadd.f32 0.0, %v630
        %v632 = vpop.f32.mrb[0].mxu0
        %v633 = vadd.f32 0.0, %v632
        %634 = vmatprep.mubr.f32.mxu0 0.0
        %635 = vmatmul.mubr.f32.gmra.mrb[0].mxu0 %v541
        %v636 = vpop.f32.mrb[0].mxu0
        %v637 = vadd.f32 0.0, %v636
        %v638 = vpop.f32.mrb[0].mxu0
        %v639 = vadd.f32 0.0, %v638
        %640 = vmatprep.mubr.f32.mxu0 0.0
        %641 = vmatmul.mubr.f32.gmra.mrb[0].mxu0 %v544
        %v642 = vpop.f32.mrb[0].mxu0
        %v643 = vadd.f32 0.0, %v642
        %v644 = vpop.f32.mrb[0].mxu0
        %v645 = vadd.f32 0.0, %v644
        %646 = vmatprep.mubr.f32.mxu0 0.0
        %647 = vmatmul.mubr.f32.gmra.mrb[0].mxu0 %v547
        %v648 = vpop.f32.mrb[0].mxu0
        %v649 = vadd.f32 0.0, %v648
        %v650 = vpop.f32.mrb[0].mxu0
        %v651 = vadd.f32 0.0, %v650
        %652 = vmatprep.mubr.f32.mxu0 0.0
        %653 = vmatmul.mubr.f32.gmra.mrb[0].mxu0 %v550
        %v654 = vpop.f32.mrb[0].mxu0
        %v655 = vadd.f32 0.0, %v654
        %v656 = vpop.f32.mrb[0].mxu0
        %v657 = vadd.f32 0.0, %v656
        %658 = vmatprep.mubr.f32.mxu0 0.0
        %659 = vmatmul.mubr.f32.gmra.mrb[0].mxu0 %v553
        %v660 = vpop.f32.mrb[0].mxu0
        %v661 = vadd.f32 0.0, %v660
        %v662 = vpop.f32.mrb[0].mxu0
        %v663 = vadd.f32 0.0, %v662
        %664 = vmatprep.mubr.f32.mxu0 0.0
        %665 = vmatmul.mubr.f32.gmra.mrb[0].mxu0 %v556
        %v666 = vpop.f32.mrb[0].mxu0
        %v667 = vadd.f32 0.0, %v666
        %v668 = vpop.f32.mrb[0].mxu0
        %v669 = vadd.f32 0.0, %v668
        %670 = vdwg.mxu0
        %v671 = vsel %vm444, 1, 0
        %v672 = vsel %vm445, 1, 0
        %vm673 = vcmp.eq.s32.totalorder %v671, 1
        %vm674 = vcmp.eq.s32.totalorder %v672, 1
        %v675 = vsel %vm673, %v631, %v625
        %v676 = vsel %vm674, %v633, %v627
        %v677 = vsel %vm673, %v643, %v637
        %v678 = vsel %vm674, %v645, %v639
        %v679 = vsel %vm673, %v655, %v649
        %v680 = vsel %vm674, %v657, %v651
        %v681 = vsel %vm673, %v667, %v661
        %v682 = vsel %vm674, %v669, %v663
        %v683 = vsel %vm450, 1, 0
        %v684 = vsel %vm451, 1, 0
        %vm685 = vcmp.eq.s32.totalorder %v683, 1
        %vm686 = vcmp.eq.s32.totalorder %v684, 1
        %v687 = vsel %vm685, %v677, %v675
        %v688 = vsel %vm686, %v678, %v676
        %v689 = vsel %vm685, %v681, %v679
        %v690 = vsel %vm686, %v682, %v680
        %v691 = vsel %vm456, 1, 0
        %v692 = vsel %vm457, 1, 0
        %vm693 = vcmp.eq.s32.totalorder %v691, 1
        %vm694 = vcmp.eq.s32.totalorder %v692, 1
        %v695 = vsel %vm693, %v689, %v687
        %v696 = vsel %vm694, %v690, %v688
        %v697 = vadd.f32 %v695, %v529
        %v698 = vadd.f32 %v696, %v531
        %v699 = vxor.u32 %v697, 2147483648
        %v700 = vxor.u32 %v698, 2147483648
        %v701 = vmul.f32 %v699, 1.442695
        %v702 = vpow.pop %v701
        %v703 = vmul.f32 %v700, 1.442695
        %v704 = vpow.pop %v703
        %v705 = vadd.f32 %v702, 1.0
        %v706 = vadd.f32 %v704, 1.0
        %v707 = vrcp.pop %v705
        %v708 = vmul.f32 1.0, %v707
        %v709 = vrcp.pop %v706
        %v710 = vmul.f32 1.0, %v709
        %v711 = vmul.f32 %v697, %v708
        %v712 = vmul.f32 %v698, %v710
        %v714 = vsel %vm533, %v430, 0
        %716 = vmatprep.subr.mxu0 %v712
        %717 = vmatpush1.msra.mxu0 %v711
        %718 = vmatprep.subr.mxu0 0.0
        %719 = vmatpush1.msra.mxu0 0.0
        %720 = vmatprep.subr.mxu0 0.0
        %721 = vmatpush1.msra.mxu0 0.0
        %722 = vmatprep.subr.mxu0 0.0
        %723 = vmatpush1.msra.mxu0 0.0
        %724 = vmatprep.subr.mxu0 0.0
        %725 = vmatpush1.msra.mxu0 0.0
        %726 = vmatprep.subr.mxu0 0.0
        %727 = vmatpush1.msra.mxu0 0.0
        %728 = vmatprep.subr.mxu0 0.0
        %729 = vmatpush1.msra.mxu0 0.0
        %730 = vmatprep.subr.mxu0 0.0
        %731 = vmatpush1.msra.mxu0 0.0
        %732 = vmatprep.subr.mxu0 0.0
        %733 = vmatpush1.msra.mxu0 0.0
        %734 = vmatprep.subr.mxu0 0.0
        %735 = vmatpush1.msra.mxu0 0.0
        %736 = vmatprep.subr.mxu0 0.0
        %737 = vmatpush1.msra.mxu0 0.0
        %738 = vmatprep.subr.mxu0 0.0
        %739 = vmatpush1.msra.mxu0 0.0
        %740 = vmatprep.subr.mxu0 0.0
        %741 = vmatpush1.msra.mxu0 0.0
        %742 = vmatprep.subr.mxu0 0.0
        %743 = vmatpush1.msra.mxu0 0.0
        %744 = vmatprep.subr.mxu0 0.0
        %745 = vmatpush1.msra.mxu0 0.0
        %746 = vmatprep.subr.mxu0 0.0
        %747 = vmatpush1.msra.mxu0 0.0
        %748 = vmatprep.subr.mxu0 0.0
        %749 = vmatpush1.msra.mxu0 0.0
        %750 = vmatprep.subr.mxu0 0.0
        %751 = vmatpush1.msra.mxu0 0.0
        %752 = vmatprep.subr.mxu0 0.0
        %753 = vmatpush1.msra.mxu0 0.0
        %754 = vmatprep.subr.mxu0 0.0
        %755 = vmatpush1.msra.mxu0 0.0
        %756 = vmatprep.subr.mxu0 0.0
        %757 = vmatpush1.msra.mxu0 0.0
        %758 = vmatprep.subr.mxu0 0.0
        %759 = vmatpush1.msra.mxu0 0.0
        %760 = vmatprep.subr.mxu0 0.0
        %761 = vmatpush1.msra.mxu0 0.0
        %762 = vmatprep.subr.mxu0 0.0
        %763 = vmatpush1.msra.mxu0 0.0
        %764 = vmatprep.subr.mxu0 0.0
        %765 = vmatpush1.msra.mxu0 0.0
        %766 = vmatprep.subr.mxu0 0.0
        %767 = vmatpush1.msra.mxu0 0.0
        %768 = vmatprep.subr.mxu0 0.0
        %769 = vmatpush1.msra.mxu0 0.0
        %770 = vmatprep.subr.mxu0 0.0
        %771 = vmatpush1.msra.mxu0 0.0
        %772 = vmatprep.subr.mxu0 0.0
        %773 = vmatpush1.msra.mxu0 0.0
        %774 = vmatprep.subr.mxu0 0.0
        %775 = vmatpush1.msra.mxu0 0.0
        %776 = vmatprep.subr.mxu0 0.0
        %777 = vmatpush1.msra.mxu0 0.0
        %778 = vmatprep.subr.mxu0 0.0
        %779 = vmatpush1.msra.mxu0 0.0
        %780 = vmatprep.mubr.f32.mxu0 0.0
        %781 = vmatmul.mubr.f32.gmra.mrb[0].mxu0 %v714
        %v782 = vpop.f32.mrb[0].mxu0
        %v783 = vadd.f32 0.0, %v782
        %v784 = vpop.f32.mrb[0].mxu0
        %v785 = vadd.f32 0.0, %v784
        %786 = vdwg.mxu0
        %v787 = vxor.u32 %v783, 2147483648
        %v788 = vxor.u32 %v785, 2147483648
        %v789 = vmul.f32 %v787, 1.442695
        %v790 = vpow.pop %v789
        %v791 = vmul.f32 %v788, 1.442695
        %v792 = vpow.pop %v791
        %v793 = vadd.f32 %v790, 1.0
        %v794 = vadd.f32 %v792, 1.0
        %v795 = vrcp.pop %v793
        %v796 = vmul.f32 1.0, %v795
        %v797 = vrcp.pop %v794
        %v798 = vmul.f32 1.0, %v797
        %v799 = vlaneseq
        %v800 = vshrl.u32 %v799, 7
        %v801 = vsub.s32 0, %v800
        %v802 = vrot.slane %v796, %v801
        %v803 = vlaneseq
        %v804 = vshrl.u32 %v803, 7
        %v805 = vsub.s32 0, %v804
        %v806 = vrot.slane %v798, %v805
        %v807 = vmul.f32 %v415, %v802
        %v808 = vmul.f32 %v416, %v806
        %v809 = vmul.f32 %v417, %v802
        %v810 = vmul.f32 %v418, %v806
        %v812 = vsel %vm458, %v431, 0
        %v815 = vsel %vm458, %v432, 0
        %817 = vmatprep.subr.mxu0 %v808
        %818 = vmatpush1.msra.mxu0 %v807
        %819 = vmatprep.subr.mxu0 %v810
        %820 = vmatpush1.msra.mxu0 %v809
        %821 = vmatprep.subr.mxu0 0.0
        %822 = vmatpush1.msra.mxu0 0.0
        %823 = vmatprep.subr.mxu0 0.0
        %824 = vmatpush1.msra.mxu0 0.0
        %825 = vmatprep.subr.mxu0 0.0
        %826 = vmatpush1.msra.mxu0 0.0
        %827 = vmatprep.subr.mxu0 0.0
        %828 = vmatpush1.msra.mxu0 0.0
        %829 = vmatprep.subr.mxu0 0.0
        %830 = vmatpush1.msra.mxu0 0.0
        %831 = vmatprep.subr.mxu0 0.0
        %832 = vmatpush1.msra.mxu0 0.0
        %833 = vmatprep.subr.mxu0 0.0
        %834 = vmatpush1.msra.mxu0 0.0
        %835 = vmatprep.subr.mxu0 0.0
        %836 = vmatpush1.msra.mxu0 0.0
        %837 = vmatprep.subr.mxu0 0.0
        %838 = vmatpush1.msra.mxu0 0.0
        %839 = vmatprep.subr.mxu0 0.0
        %840 = vmatpush1.msra.mxu0 0.0
        %841 = vmatprep.subr.mxu0 0.0
        %842 = vmatpush1.msra.mxu0 0.0
        %843 = vmatprep.subr.mxu0 0.0
        %844 = vmatpush1.msra.mxu0 0.0
        %845 = vmatprep.subr.mxu0 0.0
        %846 = vmatpush1.msra.mxu0 0.0
        %847 = vmatprep.subr.mxu0 0.0
        %848 = vmatpush1.msra.mxu0 0.0
        %849 = vmatprep.subr.mxu0 0.0
        %850 = vmatpush1.msra.mxu0 0.0
        %851 = vmatprep.subr.mxu0 0.0
        %852 = vmatpush1.msra.mxu0 0.0
        %853 = vmatprep.subr.mxu0 0.0
        %854 = vmatpush1.msra.mxu0 0.0
        %855 = vmatprep.subr.mxu0 0.0
        %856 = vmatpush1.msra.mxu0 0.0
        %857 = vmatprep.subr.mxu0 0.0
        %858 = vmatpush1.msra.mxu0 0.0
        %859 = vmatprep.subr.mxu0 0.0
        %860 = vmatpush1.msra.mxu0 0.0
        %861 = vmatprep.subr.mxu0 0.0
        %862 = vmatpush1.msra.mxu0 0.0
        %863 = vmatprep.subr.mxu0 0.0
        %864 = vmatpush1.msra.mxu0 0.0
        %865 = vmatprep.subr.mxu0 0.0
        %866 = vmatpush1.msra.mxu0 0.0
        %867 = vmatprep.subr.mxu0 0.0
        %868 = vmatpush1.msra.mxu0 0.0
        %869 = vmatprep.subr.mxu0 0.0
        %870 = vmatpush1.msra.mxu0 0.0
        %871 = vmatprep.subr.mxu0 0.0
        %872 = vmatpush1.msra.mxu0 0.0
        %873 = vmatprep.subr.mxu0 0.0
        %874 = vmatpush1.msra.mxu0 0.0
        %875 = vmatprep.subr.mxu0 0.0
        %876 = vmatpush1.msra.mxu0 0.0
        %877 = vmatprep.subr.mxu0 0.0
        %878 = vmatpush1.msra.mxu0 0.0
        %879 = vmatprep.subr.mxu0 0.0
        %880 = vmatpush1.msra.mxu0 0.0
        %881 = vmatprep.mubr.f32.mxu0 0.0
        %882 = vmatmul.mubr.f32.gmra.mrb[0].mxu0 %v812
        %v883 = vpop.f32.mrb[0].mxu0
        %v884 = vadd.f32 0.0, %v883
        %v885 = vpop.f32.mrb[0].mxu0
        %v886 = vadd.f32 0.0, %v885
        %887 = vmatprep.mubr.f32.mxu0 0.0
        %888 = vmatmul.mubr.f32.gmra.mrb[0].mxu0 %v815
        %v889 = vpop.f32.mrb[0].mxu0
        %v890 = vadd.f32 0.0, %v889
        %v891 = vpop.f32.mrb[0].mxu0
        %v892 = vadd.f32 0.0, %v891
        %893 = vdwg.mxu0
        %v894 = vadd.f32 %v884, %v886
        %895 = vadd.xlane.f32.xlu0 %v894
        %v896 = vpop.xlane.xlu0 %895
        %v897 = vadd.f32 %v890, %v892
        %898 = vadd.xlane.f32.xlu0 %v897
        %v899 = vpop.xlane.xlu0 %898
        %v900 = vmul.f32 %v884, %v884
        %v901 = vmul.f32 %v886, %v886
        %v902 = vmul.f32 %v890, %v890
        %v903 = vmul.f32 %v892, %v892
        %v904 = vadd.f32 %v900, %v901
        %905 = vadd.xlane.f32.xlu0 %v904
        %v906 = vpop.xlane.xlu0 %905
        %v907 = vadd.f32 %v902, %v903
        %908 = vadd.xlane.f32.xlu0 %v907
        %v909 = vpop.xlane.xlu0 %908
        %p910 = scmp.eq.s32.totalorder %s32, 0
        // Predicated region
        $region53: #{tpu_custom_call.1} parent=43 // pred_check
          %p911 = pneg %p910
        $region54: #{tpu_custom_call.1} parent=43 // pred_check_branch
          %913 = sbr.rel (%p911) target = $region56
        $region55: #{tpu_custom_call.1} parent=43 // pred_region
          %vm914 = vcmask 7168
          %915 = vst.msk [vmem:[%s405] sm:$0xff] %vm914, %v896
          %916 = vst.msk [vmem:[%s405 + $0x8] sm:$0xff] %vm914, %v899
          %917 = vst.msk [vmem:[%s414] sm:$0xff] %vm914, %v906
          %918 = vst.msk [vmem:[%s414 + $0x8] sm:$0xff] %vm914, %v909
        $region56: #{tpu_custom_call.1} parent=43 // pred_fallthru
          _
        %p919 = scmp.gt.s32.totalorder %s32, 0
        // Predicated region
        $region57: #{tpu_custom_call.1} parent=43 // pred_check
          %p920 = pneg %p919
        $region58: #{tpu_custom_call.1} parent=43 // pred_check_branch
          %922 = sbr.rel (%p920) target = $region60
        $region59: #{tpu_custom_call.1} parent=43 // pred_region
          %v923 = vld [vmem:[%s405] sm:$0xff]
          %v924 = vld [vmem:[%s405 + $0x8] sm:$0xff]
          %v925 = vadd.f32 %v923, %v896
          %v926 = vadd.f32 %v924, %v899
          %vm927 = vcmask 7168
          %928 = vst.msk [vmem:[%s405] sm:$0xff] %vm927, %v925
          %929 = vst.msk [vmem:[%s405 + $0x8] sm:$0xff] %vm927, %v926
          %v930 = vld [vmem:[%s414] sm:$0xff]
          %v931 = vld [vmem:[%s414 + $0x8] sm:$0xff]
          %v932 = vadd.f32 %v930, %v906
          %v933 = vadd.f32 %v931, %v909
          %934 = vst.msk [vmem:[%s414] sm:$0xff] %vm927, %v932
          %935 = vst.msk [vmem:[%s414 + $0x8] sm:$0xff] %vm927, %v933
        $region60: #{tpu_custom_call.1} parent=43 // pred_fallthru
          _
        %p936 = scmp.lt.s32.totalorder %s30, 1
        %s937 = scalar_select %p936, %s30, 1
        %p938 = scmp.lt.s32.totalorder %s31, 1
        %s939 = scalar_select %p938, %s31, 1
        %s940 = smul.addr %s939, 2
        %s941 = smul.addr %s937, 4
        %s942 = sadd.s32 %s940, %s941
        %s943 = smul.addr %s942, 8
        %s944 = scalar_lea.vmem %s6, %s943
        %p945 = scmp.lt.s32.totalorder %s30, 1
        %s946 = scalar_select %p945, %s30, 1
        %p947 = scmp.lt.s32.totalorder %s31, 1
        %s948 = scalar_select %p947, %s31, 1
        %s949 = smul.addr %s948, 2
        %s950 = smul.addr %s946, 4
        %s951 = sadd.s32 %s949, %s950
        %s952 = smul.addr %s951, 8
        %s953 = scalar_lea.vmem %s7, %s952
        // Predicated region
        $region61: #{tpu_custom_call.1} parent=43 // pred_check
          %p954 = pneg %p212
        $region62: #{tpu_custom_call.1} parent=43 // pred_check_branch
          %956 = sbr.rel (%p954) target = $region64
        $region63: #{tpu_custom_call.1} parent=43 // pred_region
          _
        $region64: #{tpu_custom_call.1} parent=43 // pred_fallthru
          _
        // Predicated region
        $region65: #{tpu_custom_call.1} parent=43 // pred_check
          %p957 = pneg %p240
        $region66: #{tpu_custom_call.1} parent=43 // pred_check_branch
          %959 = sbr.rel (%p957) target = $region68
        $region67: #{tpu_custom_call.1} parent=43 // pred_region
          _
        $region68: #{tpu_custom_call.1} parent=43 // pred_fallthru
          _
      $region44: #{tpu_custom_call.1} parent=5 // pred_fallthru
        _
      %p960 = scmp.le.s32.totalorder 2, %s20
      // Predicated region
      $region69: #{tpu_custom_call.1} parent=5 // pred_check
        %p961 = pneg %p960
      $region70: #{tpu_custom_call.1} parent=5 // pred_check_branch
        %963 = sbr.rel (%p961) target = $region72
      $region71: #{tpu_custom_call.1} parent=5 // pred_region
        %s964 = ssub.s32 %s20, 2
        // Predicated region
        $region73: #{tpu_custom_call.1} parent=71 // pred_check
          %p965 = pneg %p218
        $region74: #{tpu_custom_call.1} parent=71 // pred_check_branch
          %967 = sbr.rel (%p965) target = $region76
        $region75: #{tpu_custom_call.1} parent=71 // pred_region
          %p968 = scmp.lt.s32.totalorder %s33, 1
          %s969 = scalar_select %p968, %s33, 1
          %p970 = scmp.lt.s32.totalorder %s34, 1
          %s971 = scalar_select %p970, %s34, 1
          %s972 = smul.addr %s971, 2
          %s973 = smul.addr %s969, 4
          %s974 = sadd.s32 %s972, %s973
          %s975 = smul.addr %s974, 8
          %s976 = scalar_lea.vmem %s6, %s975
        $region76: #{tpu_custom_call.1} parent=71 // pred_fallthru
          _
        // Predicated region
        $region77: #{tpu_custom_call.1} parent=71 // pred_check
          %p977 = pneg %p246
        $region78: #{tpu_custom_call.1} parent=71 // pred_check_branch
          %979 = sbr.rel (%p977) target = $region80
        $region79: #{tpu_custom_call.1} parent=71 // pred_region
          %p980 = scmp.lt.s32.totalorder %s33, 1
          %s981 = scalar_select %p980, %s33, 1
          %p982 = scmp.lt.s32.totalorder %s34, 1
          %s983 = scalar_select %p982, %s34, 1
          %s984 = smul.addr %s983, 2
          %s985 = smul.addr %s981, 4
          %s986 = sadd.s32 %s984, %s985
          %s987 = smul.addr %s986, 8
          %s988 = scalar_lea.vmem %s7, %s987
        $region80: #{tpu_custom_call.1} parent=71 // pred_fallthru
          _
      $region72: #{tpu_custom_call.1} parent=5 // pred_fallthru
        _
    $region6: #{tpu_custom_call.1} parent=1 // loop_footer
      %s24 = sadd.s32 1, %s20
    $region7: #{tpu_custom_call.1} parent=1 // loop_footer_branch
      %19 = sbr.rel target = $region3
    $region8: #{tpu_custom_call.1} parent=1 // loop_exit
      _
    %989 = vsyncpa [#allocation3], 1
    %s990 = scalar_lea.sflag [#allocation3], 1
    %991 = vsyncpa %s990, 1
    %992 = vsyncpa [#allocation5], 1
    %s993 = scalar_lea.sflag [#allocation5], 1
    %994 = vsyncpa %s993, 1

</llo_original>
